<compile_context>
chip_gen: v5e
topology: v5e:2x2
jax: 0.10.0
libtpu: 0.0.40
codegen_flags: <defaults>
</compile_context>

<pallas_src>
import jax
import jax.numpy as jnp
from jax.experimental import pallas as pl
from jax.experimental.pallas import tpu as pltpu

LN_EPS = 1e-5  # torch.nn.LayerNorm default


def continual_classifier_kernel(x_ref, gamma_ref, beta_ref, w_ref, b_ref,
                                o_ref, xn_ref):
    """One (batch-tile, class-tile) grid step.

    LayerNorm is evaluated once per batch tile (first class tile) and cached in
    the xn_ref VMEM scratch; each class tile is then a single MXU matmul.
    """
    j = pl.program_id(1)

    @pl.when(j == 0)
    def _():
        # Two-pass mean/var (keeps PyTorch LayerNorm numerics; rsqrt -> EUP slot).
        x = x_ref[...].astype(jnp.float32)                      # (TB, D)
        mean = jnp.mean(x, axis=-1, keepdims=True)
        xc = x - mean
        var = jnp.mean(xc * xc, axis=-1, keepdims=True)          # biased variance
        inv = jax.lax.rsqrt(var + LN_EPS)
        xn = xc * inv * gamma_ref[...].astype(jnp.float32) \
             + beta_ref[...].astype(jnp.float32)
        xn_ref[...] = xn.astype(xn_ref.dtype)                    # cache for all class tiles

    y = jnp.dot(xn_ref[...], w_ref[...], preferred_element_type=jnp.float32)
    o_ref[...] = (y + b_ref[...].astype(jnp.float32)).astype(o_ref.dtype)


def _round_up(n, m):
    return ((n + m - 1) // m) * m


def _cdiv(a, b):
    return (a + b - 1) // b


def _vmem_capacity_bytes():
    """Per-core VMEM capacity (128 MiB v5e/v6e, 64 MiB per TC on v7x)."""
    try:
        cap = int(getattr(pltpu.get_tpu_info(), "vmem_capacity_bytes", 0))
        if cap > 0:
            return cap
    except Exception:
        pass
    return 64 * 1024 * 1024  # conservative (v7x-sized) default


def _plan(B, D, C, x_itemsize, w_itemsize, out_itemsize, budget):
    """Pick (tile_b, tile_n, C_pad, w_buffers)."""
    batch_align = 8 if x_itemsize >= 4 else 16            # f32 -> 8 rows, bf16 -> 16
    C_pad = _round_up(C, 128)                              # lane-dense output

    # Class (N) tiling: keep the whole head resident (single-buffered) when it
    # fits comfortably; otherwise stream (D, tile_n) slabs, double-buffered.
    if D * C_pad * w_itemsize <= budget // 2:
        tile_n, w_buffers = C_pad, 1
    else:
        max_tile_n = (budget // 2) // max(2 * D * w_itemsize, 1)
        tile_n = max(256, (max_tile_n // 256) * 256)
        tile_n = min(tile_n, C_pad)
        w_buffers = 2
        C_pad = _round_up(C_pad, tile_n)

    fixed = (2 * D * 4                                     # gamma + beta (single buffer)
             + w_buffers * D * tile_n * w_itemsize         # W slab(s)
             + w_buffers * tile_n * 4)                     # bias slab(s)
    per_row = (2 * D * x_itemsize                          # x tile (double-buffered)
               + 2 * tile_n * out_itemsize                 # out tile (double-buffered)
               + D * w_itemsize                            # cached xn scratch
               + 2 * D * 4                                 # f32 LN temporaries
               + tile_n * 4)                               # f32 matmul result
    tile_b = (budget - fixed) // max(per_row, 1)
    tile_b = max(batch_align, min(1024, (tile_b // batch_align) * batch_align))
    tile_b = min(tile_b, _round_up(B, batch_align))        # don't over-pad tiny batches

    # Guarantee >= 2 batch tiles so the "parallel" axis can shard across both
    # TensorCores on v7x (only when the batch actually has more than one tile's
    # worth of rows).
    if B > batch_align and _cdiv(B, tile_b) < 2:
        tile_b = max(batch_align, _round_up(_cdiv(B, 2), batch_align))

    return tile_b, tile_n, C_pad, w_buffers


def continual_classifier_forward(x, gamma, beta, w_t, b, *,
                                 weights_dtype=None,
                                 tile_b=None,
                                 vmem_limit_bytes=None):
    """LayerNorm(x) @ w_t + b.

    x: (B, D).  gamma/beta: (D,).  w_t: (D, C) (= head.weight.T).  b: (C,).
    weights_dtype: optional cast for w_t (e.g. jnp.bfloat16); LN stats stay f32
    and the MXU accumulates in f32.
    """
    B, D = x.shape
    C = w_t.shape[1]
    assert w_t.shape[0] == D

    if weights_dtype is not None:
        w_t = w_t.astype(weights_dtype)

    capacity = _vmem_capacity_bytes()
    if vmem_limit_bytes is None:
        vmem_limit_bytes = (capacity * 7) // 8             # headroom for Mosaic scratch
    budget = (capacity * 3) // 4                           # tile-planning budget

    x_itemsize = jnp.dtype(x.dtype).itemsize
    w_itemsize = jnp.dtype(w_t.dtype).itemsize
    out_itemsize = x_itemsize

    auto_tile_b, tile_n, C_pad, w_buffers = _plan(
        B, D, C, x_itemsize, w_itemsize, out_itemsize, budget)
    if tile_b is None:
        tile_b = auto_tile_b
    tile_b = max(8, int(tile_b))
    B_pad = _round_up(B, tile_b)

    # Wrapper-side zero padding; padded rows/cols are sliced off at the end.
    x_p = x if B_pad == B else jnp.pad(x, ((0, B_pad - B), (0, 0)))
    w_p = w_t if C_pad == C else jnp.pad(w_t, ((0, 0), (0, C_pad - C)))
    b_p = b if C_pad == C else jnp.pad(b, ((0, C_pad - C),))

    # Keep params 2-D so they map cleanly onto (sublane, lane) vregs.
    gamma2 = gamma.reshape(1, D)
    beta2 = beta.reshape(1, D)
    b2 = b_p.reshape(1, C_pad)

    grid = (B_pad // tile_b, C_pad // tile_n)

    def build(use_buffer_hints):
        def spec(shape, index_map, buffers):
            if use_buffer_hints and buffers is not None:
                return pl.BlockSpec(shape, index_map,
                                    pipeline_mode=pl.Buffered(buffers))
            return pl.BlockSpec(shape, index_map)

        # gamma/beta never change; W/bias are grid-constant only when the whole
        # head is resident (single class tile).
        const_w = 1 if w_buffers == 1 else None
        return pl.pallas_call(
            continual_classifier_kernel,
            out_shape=jax.ShapeDtypeStruct((B_pad, C_pad), x.dtype),
            grid_spec=pltpu.PrefetchScalarGridSpec(
                num_scalar_prefetch=0,
                grid=grid,
                in_specs=[
                    pl.BlockSpec((tile_b, D), lambda i, j: (i, 0)),   # x (varies with i)
                    spec((1, D), lambda i, j: (0, 0), 1),             # gamma (constant)
                    spec((1, D), lambda i, j: (0, 0), 1),             # beta  (constant)
                    spec((D, tile_n), lambda i, j: (0, j), const_w),  # W slab
                    spec((1, tile_n), lambda i, j: (0, j), const_w),  # bias slab
                ],
                out_specs=pl.BlockSpec((tile_b, tile_n), lambda i, j: (i, j)),
                scratch_shapes=[pltpu.VMEM((tile_b, D), w_p.dtype)],  # cached LN output
            ),
            compiler_params=pltpu.CompilerParams(
                dimension_semantics=("parallel", "arbitrary"),
                vmem_limit_bytes=int(vmem_limit_bytes),
            ),
        )

    try:
        out = build(True)(x_p, gamma2, beta2, w_p, b2)
    except Exception:
        # Fallback for jax versions without BlockSpec.pipeline_mode support.
        out = build(False)(x_p, gamma2, beta2, w_p, b2)
    return out[:B, :C]


def reference_forward(x, gamma, beta, w_t, b):
    """Mixed-precision reference matching the kernel (f32 LN, w-dtype matmul, f32 acc)."""
    x32 = x.astype(jnp.float32)
    mean = jnp.mean(x32, axis=-1, keepdims=True)
    var = jnp.mean((x32 - mean) ** 2, axis=-1, keepdims=True)
    xn = (x32 - mean) * jax.lax.rsqrt(var + LN_EPS) * gamma + beta
    y = jnp.dot(xn.astype(w_t.dtype), w_t, preferred_element_type=jnp.float32) + b
    return y.astype(x.dtype)


if __name__ == "__main__":
    # Small shapes consistent with the module: embed_dim=32, nb_classes=16.
    D, C = 32, 16
    key = jax.random.PRNGKey(0)
    kx, kw, kb, kx2 = jax.random.split(key, 4)

    # torch defaults: LN gamma=1, beta=0; Linear weight/bias ~ U(-1/sqrt(D), 1/sqrt(D)).
    gamma = jnp.ones((D,), dtype=jnp.float32)
    beta = jnp.zeros((D,), dtype=jnp.float32)
    bound = 1.0 / (D ** 0.5)
    w = jax.random.uniform(kw, (C, D), minval=-bound, maxval=bound, dtype=jnp.float32)
    b = jax.random.uniform(kb, (C,), minval=-bound, maxval=bound, dtype=jnp.float32)
    w_t = w.T                                              # (D, C) for the kernel

    # Case 1: aligned batch, single batch tile, fully-resident head.
    B = 8
    x = jax.random.normal(kx, (B, D), dtype=jnp.float32)
    out = jax.block_until_ready(continual_classifier_forward(x, gamma, beta, w_t, b))
    ref = reference_forward(x, gamma, beta, w_t, b)
    assert out.shape == (B, C)
    assert jnp.allclose(out, ref, atol=1e-4, rtol=1e-4), "mismatch vs reference (B=8)"

    # Case 2: non-divisible batch exercises padding and the >=2-batch-tile split.
    B2 = 10
    x2 = jax.random.normal(kx2, (B2, D), dtype=jnp.float32)
    out2 = jax.block_until_ready(continual_classifier_forward(x2, gamma, beta, w_t, b))
    ref2 = reference_forward(x2, gamma, beta, w_t, b)
    assert out2.shape == (B2, C)
    assert jnp.allclose(out2, ref2, atol=1e-4, rtol=1e-4), "mismatch vs reference (B=10)"

    # Case 3: bf16 weight path (f32 LN stats + f32 MXU accumulation).
    out3 = jax.block_until_ready(
        continual_classifier_forward(x, gamma, beta, w_t, b, weights_dtype=jnp.bfloat16))
    ref3 = reference_forward(x, gamma, beta, w_t.astype(jnp.bfloat16), b)
    assert out3.shape == (B, C)
    assert jnp.allclose(out3, ref3, atol=2e-2, rtol=2e-2), "mismatch vs reference (bf16 W)"

    print("KERNEL_OK")
</pallas_src>

<mosaic_0001>
module attributes {stable_mosaic.version = 11 : i64} {
  func.func @continual_classifier_kernel(%arg0: i32, %arg1: i32, %arg2: memref<8x32xf32, #tpu.memory_space<vmem>>, %arg3: memref<1x32xf32, #tpu.memory_space<vmem>>, %arg4: memref<1x32xf32, #tpu.memory_space<vmem>>, %arg5: memref<32x128xf32, #tpu.memory_space<vmem>>, %arg6: memref<1x128xf32, #tpu.memory_space<vmem>>, %arg7: memref<8x128xf32, #tpu.memory_space<vmem>>, %arg8: memref<8x32xf32, #tpu.memory_space<vmem>>) attributes {dimension_semantics = [#tpu.dimension_semantics<parallel>, #tpu.dimension_semantics<arbitrary>], iteration_bounds = array<i64: 1, 1>, scalar_prefetch = 0 : i64, scratch_operands = 1 : i64, tpu.core_type = #tpu.core_type<tc>, window_params = [{transform_indices = @transform_0, window_bounds = array<i64: 8, 32>}, {pipeline_mode = #tpu.pipeline_mode<synchronous>, transform_indices = @transform_1, window_bounds = array<i64: 1, 32>}, {pipeline_mode = #tpu.pipeline_mode<synchronous>, transform_indices = @transform_2, window_bounds = array<i64: 1, 32>}, {pipeline_mode = #tpu.pipeline_mode<synchronous>, transform_indices = @transform_3, window_bounds = array<i64: 32, 128>}, {pipeline_mode = #tpu.pipeline_mode<synchronous>, transform_indices = @transform_4, window_bounds = array<i64: 1, 128>}, {transform_indices = @transform_5, window_bounds = array<i64: 8, 128>}]} {
    %c0_i32 = arith.constant 0 : i32
    %0 = arith.cmpi eq, %arg1, %c0_i32 : i32
    %1 = arith.extui %0 : i1 to i32
    %c0_i32_0 = arith.constant 0 : i32
    %2 = arith.cmpi ne, %1, %c0_i32_0 : i32
    scf.if %2 {
      %c0_8 = arith.constant 0 : index
      %c0_9 = arith.constant 0 : index
      %10 = vector.load %arg2[%c0_8, %c0_9] : memref<8x32xf32, #tpu.memory_space<vmem>>, vector<8x32xf32>
      %cst_10 = arith.constant dense<0.000000e+00> : vector<8xf32>
      %11 = vector.multi_reduction <add>, %10, %cst_10 [1] : vector<8x32xf32> to vector<8xf32>
      %12 = vector.shape_cast %11 : vector<8xf32> to vector<8x1xf32>
      %cst_11 = arith.constant 3.200000e+01 : f32
      %13 = vector.broadcast %cst_11 : f32 to vector<8x1xf32>
      %14 = arith.divf %12, %13 : vector<8x1xf32>
      %15 = vector.broadcast %14 : vector<8x1xf32> to vector<8x32xf32>
      %16 = arith.subf %10, %15 : vector<8x32xf32>
      %17 = arith.mulf %16, %16 : vector<8x32xf32>
      %cst_12 = arith.constant dense<0.000000e+00> : vector<8xf32>
      %18 = vector.multi_reduction <add>, %17, %cst_12 [1] : vector<8x32xf32> to vector<8xf32>
      %19 = vector.shape_cast %18 : vector<8xf32> to vector<8x1xf32>
      %cst_13 = arith.constant 3.200000e+01 : f32
      %20 = vector.broadcast %cst_13 : f32 to vector<8x1xf32>
      %21 = arith.divf %19, %20 : vector<8x1xf32>
      %cst_14 = arith.constant 9.99999974E-6 : f32
      %22 = vector.broadcast %cst_14 : f32 to vector<8x1xf32>
      %23 = arith.addf %21, %22 : vector<8x1xf32>
      %24 = math.rsqrt %23 : vector<8x1xf32>
      %25 = vector.broadcast %24 : vector<8x1xf32> to vector<8x32xf32>
      %26 = arith.mulf %16, %25 : vector<8x32xf32>
      %c0_15 = arith.constant 0 : index
      %c0_16 = arith.constant 0 : index
      %27 = vector.load %arg3[%c0_15, %c0_16] : memref<1x32xf32, #tpu.memory_space<vmem>>, vector<1x32xf32>
      %28 = vector.broadcast %27 : vector<1x32xf32> to vector<8x32xf32>
      %29 = arith.mulf %26, %28 : vector<8x32xf32>
      %c0_17 = arith.constant 0 : index
      %c0_18 = arith.constant 0 : index
      %30 = vector.load %arg4[%c0_17, %c0_18] : memref<1x32xf32, #tpu.memory_space<vmem>>, vector<1x32xf32>
      %31 = vector.broadcast %30 : vector<1x32xf32> to vector<8x32xf32>
      %32 = arith.addf %29, %31 : vector<8x32xf32>
      %c0_19 = arith.constant 0 : index
      %c0_20 = arith.constant 0 : index
      %33 = vector.load %arg8[%c0_19, %c0_20] : memref<8x32xf32, #tpu.memory_space<vmem>>, vector<8x32xf32>
      tpu.vector_store %arg8[%c0_19, %c0_20], %32 {strides = array<i32>} : memref<8x32xf32, #tpu.memory_space<vmem>>, vector<8x32xf32>,
    } else {
    }
    %c0 = arith.constant 0 : index
    %c0_1 = arith.constant 0 : index
    %3 = vector.load %arg8[%c0, %c0_1] : memref<8x32xf32, #tpu.memory_space<vmem>>, vector<8x32xf32>
    %c0_2 = arith.constant 0 : index
    %c0_3 = arith.constant 0 : index
    %4 = vector.load %arg5[%c0_2, %c0_3] : memref<32x128xf32, #tpu.memory_space<vmem>>, vector<32x128xf32>
    %cst = arith.constant dense<0.000000e+00> : vector<8x128xf32>
    %5 = tpu.matmul %3, %4, %cst {dimension_numbers = #tpu.dot_dimension_numbers<[1], [0], [0], [1], [0, 0, 1, 1], [], []>} : vector<8x32xf32>, vector<32x128xf32>, vector<8x128xf32> -> vector<8x128xf32>
    %c0_4 = arith.constant 0 : index
    %c0_5 = arith.constant 0 : index
    %6 = vector.load %arg6[%c0_4, %c0_5] : memref<1x128xf32, #tpu.memory_space<vmem>>, vector<1x128xf32>
    %7 = vector.broadcast %6 : vector<1x128xf32> to vector<8x128xf32>
    %8 = arith.addf %5, %7 : vector<8x128xf32>
    %c0_6 = arith.constant 0 : index
    %c0_7 = arith.constant 0 : index
    %9 = vector.load %arg7[%c0_6, %c0_7] : memref<8x128xf32, #tpu.memory_space<vmem>>, vector<8x128xf32>
    tpu.vector_store %arg7[%c0_6, %c0_7], %8 {strides = array<i32>} : memref<8x128xf32, #tpu.memory_space<vmem>>, vector<8x128xf32>,
    return
  }
  func.func @transform_0(%arg0: i32, %arg1: i32) -> (i32, i32) {
    %c0_i32 = arith.constant 0 : i32
    %c0_i32_0 = arith.constant 0 : i32
    return %arg0, %c0_i32 : i32, i32
  }
  func.func @transform_1(%arg0: i32, %arg1: i32) -> (i32, i32) {
    %c0_i32 = arith.constant 0 : i32
    %c0_i32_0 = arith.constant 0 : i32
    %c0_i32_1 = arith.constant 0 : i32
    return %c0_i32, %c0_i32_0 : i32, i32
  }
  func.func @transform_2(%arg0: i32, %arg1: i32) -> (i32, i32) {
    %c0_i32 = arith.constant 0 : i32
    %c0_i32_0 = arith.constant 0 : i32
    %c0_i32_1 = arith.constant 0 : i32
    return %c0_i32, %c0_i32_0 : i32, i32
  }
  func.func @transform_3(%arg0: i32, %arg1: i32) -> (i32, i32) {
    %c0_i32 = arith.constant 0 : i32
    %c0_i32_0 = arith.constant 0 : i32
    return %c0_i32, %arg1 : i32, i32
  }
  func.func @transform_4(%arg0: i32, %arg1: i32) -> (i32, i32) {
    %c0_i32 = arith.constant 0 : i32
    %c0_i32_0 = arith.constant 0 : i32
    return %c0_i32, %arg1 : i32, i32
  }
  func.func @transform_5(%arg0: i32, %arg1: i32) -> (i32, i32) {
    %c0_i32 = arith.constant 0 : i32
    return %arg0, %arg1 : i32, i32
  }
}

module attributes {stable_mosaic.version = 11 : i64} {
  func.func @continual_classifier_kernel(%arg0: i32, %arg1: i32, %arg2: memref<8x32xf32, #tpu.memory_space<vmem>>, %arg3: memref<1x32xf32, #tpu.memory_space<vmem>>, %arg4: memref<1x32xf32, #tpu.memory_space<vmem>>, %arg5: memref<32x128xf32, #tpu.memory_space<vmem>>, %arg6: memref<1x128xf32, #tpu.memory_space<vmem>>, %arg7: memref<8x128xf32, #tpu.memory_space<vmem>>, %arg8: memref<8x32xf32, #tpu.memory_space<vmem>>) attributes {dimension_semantics = [#tpu.dimension_semantics<parallel>, #tpu.dimension_semantics<arbitrary>], iteration_bounds = array<i64: 1, 1>, scalar_prefetch = 0 : i64, scratch_operands = 1 : i64, tpu.core_type = #tpu.core_type<tc>, window_params = [{transform_indices = @transform_0, window_bounds = array<i64: 8, 32>}, {pipeline_mode = #tpu.pipeline_mode<synchronous>, transform_indices = @transform_1, window_bounds = array<i64: 1, 32>}, {pipeline_mode = #tpu.pipeline_mode<synchronous>, transform_indices = @transform_2, window_bounds = array<i64: 1, 32>}, {transform_indices = @transform_3, window_bounds = array<i64: 32, 128>}, {transform_indices = @transform_4, window_bounds = array<i64: 1, 128>}, {transform_indices = @transform_5, window_bounds = array<i64: 8, 128>}]} {
    %c0_i32 = arith.constant 0 : i32
    %0 = arith.cmpi eq, %arg1, %c0_i32 : i32
    %1 = arith.extui %0 : i1 to i32
    %c0_i32_0 = arith.constant 0 : i32
    %2 = arith.cmpi ne, %1, %c0_i32_0 : i32
    scf.if %2 {
      %c0_8 = arith.constant 0 : index
      %c0_9 = arith.constant 0 : index
      %10 = vector.load %arg2[%c0_8, %c0_9] : memref<8x32xf32, #tpu.memory_space<vmem>>, vector<8x32xf32>
      %cst_10 = arith.constant dense<0.000000e+00> : vector<8xf32>
      %11 = vector.multi_reduction <add>, %10, %cst_10 [1] : vector<8x32xf32> to vector<8xf32>
      %12 = vector.shape_cast %11 : vector<8xf32> to vector<8x1xf32>
      %cst_11 = arith.constant 3.200000e+01 : f32
      %13 = vector.broadcast %cst_11 : f32 to vector<8x1xf32>
      %14 = arith.divf %12, %13 : vector<8x1xf32>
      %15 = vector.broadcast %14 : vector<8x1xf32> to vector<8x32xf32>
      %16 = arith.subf %10, %15 : vector<8x32xf32>
      %17 = arith.mulf %16, %16 : vector<8x32xf32>
      %cst_12 = arith.constant dense<0.000000e+00> : vector<8xf32>
      %18 = vector.multi_reduction <add>, %17, %cst_12 [1] : vector<8x32xf32> to vector<8xf32>
      %19 = vector.shape_cast %18 : vector<8xf32> to vector<8x1xf32>
      %cst_13 = arith.constant 3.200000e+01 : f32
      %20 = vector.broadcast %cst_13 : f32 to vector<8x1xf32>
      %21 = arith.divf %19, %20 : vector<8x1xf32>
      %cst_14 = arith.constant 9.99999974E-6 : f32
      %22 = vector.broadcast %cst_14 : f32 to vector<8x1xf32>
      %23 = arith.addf %21, %22 : vector<8x1xf32>
      %24 = math.rsqrt %23 : vector<8x1xf32>
      %25 = vector.broadcast %24 : vector<8x1xf32> to vector<8x32xf32>
      %26 = arith.mulf %16, %25 : vector<8x32xf32>
      %c0_15 = arith.constant 0 : index
      %c0_16 = arith.constant 0 : index
      %27 = vector.load %arg3[%c0_15, %c0_16] : memref<1x32xf32, #tpu.memory_space<vmem>>, vector<1x32xf32>
      %28 = vector.broadcast %27 : vector<1x32xf32> to vector<8x32xf32>
      %29 = arith.mulf %26, %28 : vector<8x32xf32>
      %c0_17 = arith.constant 0 : index
      %c0_18 = arith.constant 0 : index
      %30 = vector.load %arg4[%c0_17, %c0_18] : memref<1x32xf32, #tpu.memory_space<vmem>>, vector<1x32xf32>
      %31 = vector.broadcast %30 : vector<1x32xf32> to vector<8x32xf32>
      %32 = arith.addf %29, %31 : vector<8x32xf32>
      %c0_19 = arith.constant 0 : index
      %c0_20 = arith.constant 0 : index
      %33 = vector.load %arg8[%c0_19, %c0_20] : memref<8x32xf32, #tpu.memory_space<vmem>>, vector<8x32xf32>
      tpu.vector_store %arg8[%c0_19, %c0_20], %32 {strides = array<i32>} : memref<8x32xf32, #tpu.memory_space<vmem>>, vector<8x32xf32>,
    } else {
    }
    %c0 = arith.constant 0 : index
    %c0_1 = arith.constant 0 : index
    %3 = vector.load %arg8[%c0, %c0_1] : memref<8x32xf32, #tpu.memory_space<vmem>>, vector<8x32xf32>
    %c0_2 = arith.constant 0 : index
    %c0_3 = arith.constant 0 : index
    %4 = vector.load %arg5[%c0_2, %c0_3] : memref<32x128xf32, #tpu.memory_space<vmem>>, vector<32x128xf32>
    %cst = arith.constant dense<0.000000e+00> : vector<8x128xf32>
    %5 = tpu.matmul %3, %4, %cst {dimension_numbers = #tpu.dot_dimension_numbers<[1], [0], [0], [1], [0, 0, 1, 1], [], []>} : vector<8x32xf32>, vector<32x128xf32>, vector<8x128xf32> -> vector<8x128xf32>
    %c0_4 = arith.constant 0 : index
    %c0_5 = arith.constant 0 : index
    %6 = vector.load %arg6[%c0_4, %c0_5] : memref<1x128xf32, #tpu.memory_space<vmem>>, vector<1x128xf32>
    %7 = vector.broadcast %6 : vector<1x128xf32> to vector<8x128xf32>
    %8 = arith.addf %5, %7 : vector<8x128xf32>
    %c0_6 = arith.constant 0 : index
    %c0_7 = arith.constant 0 : index
    %9 = vector.load %arg7[%c0_6, %c0_7] : memref<8x128xf32, #tpu.memory_space<vmem>>, vector<8x128xf32>
    tpu.vector_store %arg7[%c0_6, %c0_7], %8 {strides = array<i32>} : memref<8x128xf32, #tpu.memory_space<vmem>>, vector<8x128xf32>,
    return
  }
  func.func @transform_0(%arg0: i32, %arg1: i32) -> (i32, i32) {
    %c0_i32 = arith.constant 0 : i32
    %c0_i32_0 = arith.constant 0 : i32
    return %arg0, %c0_i32 : i32, i32
  }
  func.func @transform_1(%arg0: i32, %arg1: i32) -> (i32, i32) {
    %c0_i32 = arith.constant 0 : i32
    %c0_i32_0 = arith.constant 0 : i32
    %c0_i32_1 = arith.constant 0 : i32
    return %c0_i32, %c0_i32_0 : i32, i32
  }
  func.func @transform_2(%arg0: i32, %arg1: i32) -> (i32, i32) {
    %c0_i32 = arith.constant 0 : i32
    %c0_i32_0 = arith.constant 0 : i32
    %c0_i32_1 = arith.constant 0 : i32
    return %c0_i32, %c0_i32_0 : i32, i32
  }
  func.func @transform_3(%arg0: i32, %arg1: i32) -> (i32, i32) {
    %c0_i32 = arith.constant 0 : i32
    %c0_i32_0 = arith.constant 0 : i32
    return %c0_i32, %arg1 : i32, i32
  }
  func.func @transform_4(%arg0: i32, %arg1: i32) -> (i32, i32) {
    %c0_i32 = arith.constant 0 : i32
    %c0_i32_0 = arith.constant 0 : i32
    return %c0_i32, %arg1 : i32, i32
  }
  func.func @transform_5(%arg0: i32, %arg1: i32) -> (i32, i32) {
    %c0_i32 = arith.constant 0 : i32
    return %arg0, %arg1 : i32, i32
  }
}

</mosaic_0001>

<llo_original>
// kernel: tpu_custom_call.1
$region0: #{tpu_custom_call.1}
  #allocation0 [shape = 'u32[]', space=smem, size = 0x4, offset = 0x4, fixed_abs, tag = 'smem constant byte address 0x4 - core index']
  #allocation1 [shape = 'u32[72,128]{1,0:T(1,128)}', space=vmem, size = 0x9000, scoped, tag = 'internal scratch']
  #allocation2 [shape = 'f32[8,32]{1,0:T(8,128)}', space=vmem, size = 0x1000, scoped, tag = 'scratch operand']
  %s0 = inlined_call_operand.hbm [shape: f32[8,32], index: 0, kind: input, shape index: {}]
  %s1 = inlined_call_operand.hbm [shape: f32[1,32], index: 1, kind: input, shape index: {}]
  %s2 = inlined_call_operand.vmem [shape: f32[1,32], index: 2, kind: input, shape index: {}]
  %s3 = inlined_call_operand.hbm [shape: f32[32,128], index: 3, kind: input, shape index: {}]
  %s4 = inlined_call_operand.vmem [shape: f32[1,128], index: 4, kind: input, shape index: {}]
  %s5 = inlined_call_operand.hbm [shape: f32[8,128], index: 5, kind: output, shape index: {}]
  %s6 = sld [smem:[#allocation0]]
  $region46: #{tpu_custom_call.1} parent=0
    _
  %s8 = ssub.s32 1, %s6
  %s9 = scalar_select 0, %s8, %s6
  $region1: #{tpu_custom_call.1} parent=0
    #allocation3 [shape = 'u8[4096]{0}', space=vmem, size = 0x1000, scoped, tag = 'input window, operand 0, single buffered']
    #allocation4 [shape = 's32[1]{0}', space=sflag, size = 0x4, scoped, tag = 'scoped memory for tpu_custom_call.1']
    #allocation5 [shape = 's32[1]{0}', space=sflag, size = 0x4, scoped, tag = 'scoped memory for tpu_custom_call.1']
    #allocation6 [shape = 'u8[512]{0}', space=vmem, size = 0x400, scoped, tag = 'input window, operand 1, single buffered']
    #allocation7 [shape = 's32[1]{0}', space=sflag, size = 0x4, scoped, tag = 'scoped memory for tpu_custom_call.1']
    #allocation8 [shape = 'u8[16384]{0}', space=vmem, size = 0x4000, scoped, tag = 'input window, operand 3, single buffered']
    #allocation9 [shape = 'u8[4096]{0}', space=vmem, size = 0x1000, scoped, tag = 'output window, operand 0, single buffered']
    %10 = vsyncpa [#allocation4], 0
    %11 = vsyncpa [#allocation7], 0
    %12 = vsyncpa [#allocation5], 0
    // Predicated region
    $region2: #{tpu_custom_call.1} parent=1 // pred_check
      _
    $region3: #{tpu_custom_call.1} parent=1 // pred_check_branch
      %14 = sbr.rel (0) target = $region5
    $region4: #{tpu_custom_call.1} parent=1 // pred_region
      %16 = vsyncadd [#allocation4], 0
      %s18 = sshll.u32 %s0, 4
      %s19 = int_to_ptr.hbm [resolvable:$true] %s18
      %s20 = sshll.u32 [#allocation3], 4
      %s21 = int_to_ptr.vmem [resolvable:$true] %s20
      %23 = dma.hbm_to_vmem [thread:$0]  %s19, 128, %s21, [#allocation4]
    $region5: #{tpu_custom_call.1} parent=1 // pred_fallthru
      _
    // Predicated region
    $region6: #{tpu_custom_call.1} parent=1 // pred_check
      _
    $region7: #{tpu_custom_call.1} parent=1 // pred_check_branch
      %25 = sbr.rel (0) target = $region9
    $region8: #{tpu_custom_call.1} parent=1 // pred_region
      %27 = vsyncadd [#allocation7], 0
      %s29 = sshll.u32 %s1, 4
      %s30 = int_to_ptr.hbm [resolvable:$true] %s29
      %s31 = sshll.u32 [#allocation6], 4
      %s32 = int_to_ptr.vmem [resolvable:$true] %s31
      %34 = dma.hbm_to_vmem [thread:$0]  %s30, 16, %s32, [#allocation7]
    $region9: #{tpu_custom_call.1} parent=1 // pred_fallthru
      _
    // Predicated region
    $region10: #{tpu_custom_call.1} parent=1 // pred_check
      _
    $region11: #{tpu_custom_call.1} parent=1 // pred_check_branch
      %36 = sbr.rel (0) target = $region13
    $region12: #{tpu_custom_call.1} parent=1 // pred_region
      _
    $region13: #{tpu_custom_call.1} parent=1 // pred_fallthru
      _
    // Predicated region
    $region14: #{tpu_custom_call.1} parent=1 // pred_check
      _
    $region15: #{tpu_custom_call.1} parent=1 // pred_check_branch
      %38 = sbr.rel (0) target = $region17
    $region16: #{tpu_custom_call.1} parent=1 // pred_region
      %40 = vsyncadd [#allocation7], 0
      %s41 = sshll.u32 %s3, 4
      %s42 = int_to_ptr.hbm [resolvable:$true] %s41
      %s43 = sshll.u32 [#allocation8], 4
      %s44 = int_to_ptr.vmem [resolvable:$true] %s43
      %49 = dma.hbm_to_vmem [thread:$0]  %s42, 512, %s44, [#allocation7], 128, 128, 8
    $region17: #{tpu_custom_call.1} parent=1 // pred_fallthru
      _
    // Predicated region
    $region18: #{tpu_custom_call.1} parent=1 // pred_check
      _
    $region19: #{tpu_custom_call.1} parent=1 // pred_check_branch
      %51 = sbr.rel (0) target = $region21
    $region20: #{tpu_custom_call.1} parent=1 // pred_region
      _
    $region21: #{tpu_custom_call.1} parent=1 // pred_fallthru
      _
    // Predicated region
    $region22: #{tpu_custom_call.1} parent=1 // pred_check
      _
    $region23: #{tpu_custom_call.1} parent=1 // pred_check_branch
      %53 = sbr.rel (0) target = $region25
    $region24: #{tpu_custom_call.1} parent=1 // pred_region
      %55 = dma.done [#allocation4], 128
    $region25: #{tpu_custom_call.1} parent=1 // pred_fallthru
      _
    // Predicated region
    $region26: #{tpu_custom_call.1} parent=1 // pred_check
      _
    $region27: #{tpu_custom_call.1} parent=1 // pred_check_branch
      %57 = sbr.rel (0) target = $region29
    $region28: #{tpu_custom_call.1} parent=1 // pred_region
      %59 = dma.done [#allocation7], 16
    $region29: #{tpu_custom_call.1} parent=1 // pred_fallthru
      _
    // Predicated region
    $region30: #{tpu_custom_call.1} parent=1 // pred_check
      _
    $region31: #{tpu_custom_call.1} parent=1 // pred_check_branch
      %61 = sbr.rel (0) target = $region33
    $region32: #{tpu_custom_call.1} parent=1 // pred_region
      %63 = dma.done [#allocation7], 512
    $region33: #{tpu_custom_call.1} parent=1 // pred_fallthru
      _
    %p64 = scmp.eq.s32.totalorder 0, 0
    // Predicated region
    $region34: #{tpu_custom_call.1} parent=1 // pred_check
      %p65 = pneg %p64
    $region35: #{tpu_custom_call.1} parent=1 // pred_check_branch
      %67 = sbr.rel (%p65) target = $region37
    $region36: #{tpu_custom_call.1} parent=1 // pred_region
      %v68 = vld [vmem:[#allocation3] sm:$0xff]
      %vm69 = vcmask 261120
      %v70 = vsel %vm69, %v68, 0.0
      %71 = vadd.xlane.f32.xlu0 %v70
      %v72 = vpop.xlane.xlu0 %71
      %v73 = vrcp.pop 32.0
      %v74 = vmul.f32 32.0, %v73
      %v75 = vsub.f32 1.0, %v74
      %v76 = vmul.f32 %v73, %v75
      %v77 = vadd.f32 %v73, %v76
      %vm78 = vweird.f32 %v73
      %v79 = vsel %vm78, %v73, %v77
      %v80 = vmul.f32 %v72, %v79
      %v81 = vsub.f32 %v68, %v80
      %v82 = vmul.f32 %v81, %v81
      %v83 = vsel %vm69, %v82, 0.0
      %84 = vadd.xlane.f32.xlu0 %v83
      %v85 = vpop.xlane.xlu0 %84
      %v86 = vmul.f32 %v85, %v79
      %v87 = vadd.f32 %v86, 1e-05
      %v88 = vrsqrt.pop %v87
      %v89 = vmul.f32 %v88, %v87
      %v90 = vmul.f32 %v89, %v88
      %v91 = vmul.f32 0.5, %v90
      %v92 = vsub.f32 1.5, %v91
      %v93 = vmul.f32 %v88, %v92
      %vm94 = vweird.f32 %v87
      %vm95 = vweird.f32 %v88
      %vm96 = vmor %vm94, %vm95
      %v97 = vsel %vm96, %v88, %v93
      %v98 = vmul.f32 %v81, %v97
      %v99 = vld [vmem:[#allocation6] sm:$0x1]
      %v101 = vperm.slane %v99, 0
      %v103 = vmul.f32 %v98, %v101
      %v104 = vld [vmem:[%s2] sm:$0x1]
      %v106 = vperm.slane %v104, 0
      %v108 = vadd.f32 %v103, %v106
      %109 = vst.msk [vmem:[#allocation2] sm:$0xff] %vm69, %v108
    $region37: #{tpu_custom_call.1} parent=1 // pred_fallthru
      _
    %v110 = vld [vmem:[#allocation2] sm:$0xff]
    %v111 = vld [vmem:[#allocation8] sm:$0xff]
    %v112 = vld [vmem:[#allocation8 + $0x8] sm:$0xff]
    %v113 = vld [vmem:[#allocation8 + $0x10] sm:$0xff]
    %v114 = vld [vmem:[#allocation8 + $0x18] sm:$0xff]
    %v115 = vld [vmem:[%s4] sm:$0x1]
    %v117 = vperm.slane %v115, 0
    %vm119 = vcmask 261120
    %v121 = vsel %vm119, %v110, 0
    %123 = vmatpush.msra.mxu0 0.0
    %124 = vmatpush.msra.mxu0 0.0
    %125 = vmatpush.msra.mxu0 0.0
    %126 = vmatpush.msra.mxu0 0.0
    %127 = vmatpush.msra.mxu0 0.0
    %128 = vmatpush.msra.mxu0 0.0
    %129 = vmatpush.msra.mxu0 0.0
    %130 = vmatpush.msra.mxu0 0.0
    %131 = vmatpush.msra.mxu0 0.0
    %132 = vmatpush.msra.mxu0 0.0
    %133 = vmatpush.msra.mxu0 0.0
    %134 = vmatpush.msra.mxu0 0.0
    %135 = vmatpush.msra.mxu0 %v114
    %136 = vmatpush.msra.mxu0 %v113
    %137 = vmatpush.msra.mxu0 %v112
    %138 = vmatpush.msra.mxu0 %v111
    %139 = vmatmul.f32.gmra.mxu0 %v121
    %v140 = vpop.f32.mrf.mxu0
    %v141 = vadd.f32 %v117, %v140
    %142 = vdwg.mxu0
    %143 = vst [vmem:[#allocation9] sm:$0xff] %v141
    // Predicated region
    $region38: #{tpu_custom_call.1} parent=1 // pred_check
      _
    $region39: #{tpu_custom_call.1} parent=1 // pred_check_branch
      %145 = sbr.rel (0) target = $region41
    $region40: #{tpu_custom_call.1} parent=1 // pred_region
      %147 = vsyncadd [#allocation5], 0
      %s149 = sshll.u32 [#allocation9], 4
      %s150 = int_to_ptr.vmem [resolvable:$true] %s149
      %s151 = sshll.u32 %s5, 4
      %s152 = int_to_ptr.hbm [resolvable:$true] %s151
      %154 = dma.vmem_to_hbm [thread:$0]  %s150, 128, %s152, [#allocation5]
    $region41: #{tpu_custom_call.1} parent=1 // pred_fallthru
      _
    // Predicated region
    $region42: #{tpu_custom_call.1} parent=1 // pred_check
      _
    $region43: #{tpu_custom_call.1} parent=1 // pred_check_branch
      %156 = sbr.rel (0) target = $region45
    $region44: #{tpu_custom_call.1} parent=1 // pred_region
      %158 = dma.done [#allocation5], 128
    $region45: #{tpu_custom_call.1} parent=1 // pred_fallthru
      _
    %159 = vsyncpa [#allocation4], 1
    %160 = vsyncpa [#allocation7], 1
    %161 = vsyncpa [#allocation5], 1

// kernel: tpu_custom_call.1
$region0: #{tpu_custom_call.1}
  #allocation0 [shape = 'u32[]', space=smem, size = 0x4, offset = 0x4, fixed_abs, tag = 'smem constant byte address 0x4 - core index']
  #allocation1 [shape = 'u32[72,128]{1,0:T(1,128)}', space=vmem, size = 0x9000, scoped, tag = 'internal scratch']
  #allocation2 [shape = 'f32[8,32]{1,0:T(8,128)}', space=vmem, size = 0x1000, scoped, tag = 'scratch operand']
  %s0 = inlined_call_operand.hbm [shape: f32[8,32], index: 0, kind: input, shape index: {}]
  %s1 = inlined_call_operand.hbm [shape: f32[1,32], index: 1, kind: input, shape index: {}]
  %s2 = inlined_call_operand.vmem [shape: f32[1,32], index: 2, kind: input, shape index: {}]
  %s3 = inlined_call_operand.hbm [shape: f32[32,128], index: 3, kind: input, shape index: {}]
  %s4 = inlined_call_operand.vmem [shape: f32[1,128], index: 4, kind: input, shape index: {}]
  %s5 = inlined_call_operand.hbm [shape: f32[8,128], index: 5, kind: output, shape index: {}]
  %s6 = sld [smem:[#allocation0]]
  $region46: #{tpu_custom_call.1} parent=0
    _
  %s8 = ssub.s32 1, %s6
  %s9 = scalar_select 0, %s8, %s6
  $region1: #{tpu_custom_call.1} parent=0
    #allocation3 [shape = 'u8[4096]{0}', space=vmem, size = 0x1000, scoped, tag = 'input window, operand 0, single buffered']
    #allocation4 [shape = 's32[1]{0}', space=sflag, size = 0x4, scoped, tag = 'scoped memory for tpu_custom_call.1']
    #allocation5 [shape = 's32[1]{0}', space=sflag, size = 0x4, scoped, tag = 'scoped memory for tpu_custom_call.1']
    #allocation6 [shape = 'u8[512]{0}', space=vmem, size = 0x400, scoped, tag = 'input window, operand 1, single buffered']
    #allocation7 [shape = 's32[1]{0}', space=sflag, size = 0x4, scoped, tag = 'scoped memory for tpu_custom_call.1']
    #allocation8 [shape = 'u8[16384]{0}', space=vmem, size = 0x4000, scoped, tag = 'input window, operand 3, single buffered']
    #allocation9 [shape = 'u8[4096]{0}', space=vmem, size = 0x1000, scoped, tag = 'output window, operand 0, single buffered']
    %10 = vsyncpa [#allocation4], 0
    %11 = vsyncpa [#allocation7], 0
    %12 = vsyncpa [#allocation5], 0
    // Predicated region
    $region2: #{tpu_custom_call.1} parent=1 // pred_check
      _
    $region3: #{tpu_custom_call.1} parent=1 // pred_check_branch
      %14 = sbr.rel (0) target = $region5
    $region4: #{tpu_custom_call.1} parent=1 // pred_region
      %16 = vsyncadd [#allocation4], 0
      %s18 = sshll.u32 %s0, 4
      %s19 = int_to_ptr.hbm [resolvable:$true] %s18
      %s20 = sshll.u32 [#allocation3], 4
      %s21 = int_to_ptr.vmem [resolvable:$true] %s20
      %23 = dma.hbm_to_vmem [thread:$0]  %s19, 128, %s21, [#allocation4]
    $region5: #{tpu_custom_call.1} parent=1 // pred_fallthru
      _
    // Predicated region
    $region6: #{tpu_custom_call.1} parent=1 // pred_check
      _
    $region7: #{tpu_custom_call.1} parent=1 // pred_check_branch
      %25 = sbr.rel (0) target = $region9
    $region8: #{tpu_custom_call.1} parent=1 // pred_region
      %27 = vsyncadd [#allocation7], 0
      %s29 = sshll.u32 %s1, 4
      %s30 = int_to_ptr.hbm [resolvable:$true] %s29
      %s31 = sshll.u32 [#allocation6], 4
      %s32 = int_to_ptr.vmem [resolvable:$true] %s31
      %34 = dma.hbm_to_vmem [thread:$0]  %s30, 16, %s32, [#allocation7]
    $region9: #{tpu_custom_call.1} parent=1 // pred_fallthru
      _
    // Predicated region
    $region10: #{tpu_custom_call.1} parent=1 // pred_check
      _
    $region11: #{tpu_custom_call.1} parent=1 // pred_check_branch
      %36 = sbr.rel (0) target = $region13
    $region12: #{tpu_custom_call.1} parent=1 // pred_region
      _
    $region13: #{tpu_custom_call.1} parent=1 // pred_fallthru
      _
    // Predicated region
    $region14: #{tpu_custom_call.1} parent=1 // pred_check
      _
    $region15: #{tpu_custom_call.1} parent=1 // pred_check_branch
      %38 = sbr.rel (0) target = $region17
    $region16: #{tpu_custom_call.1} parent=1 // pred_region
      %40 = vsyncadd [#allocation7], 0
      %s41 = sshll.u32 %s3, 4
      %s42 = int_to_ptr.hbm [resolvable:$true] %s41
      %s43 = sshll.u32 [#allocation8], 4
      %s44 = int_to_ptr.vmem [resolvable:$true] %s43
      %49 = dma.hbm_to_vmem [thread:$0]  %s42, 512, %s44, [#allocation7], 128, 128, 8
    $region17: #{tpu_custom_call.1} parent=1 // pred_fallthru
      _
    // Predicated region
    $region18: #{tpu_custom_call.1} parent=1 // pred_check
      _
    $region19: #{tpu_custom_call.1} parent=1 // pred_check_branch
      %51 = sbr.rel (0) target = $region21
    $region20: #{tpu_custom_call.1} parent=1 // pred_region
      _
    $region21: #{tpu_custom_call.1} parent=1 // pred_fallthru
      _
    // Predicated region
    $region22: #{tpu_custom_call.1} parent=1 // pred_check
      _
    $region23: #{tpu_custom_call.1} parent=1 // pred_check_branch
      %53 = sbr.rel (0) target = $region25
    $region24: #{tpu_custom_call.1} parent=1 // pred_region
      %55 = dma.done [#allocation4], 128
    $region25: #{tpu_custom_call.1} parent=1 // pred_fallthru
      _
    // Predicated region
    $region26: #{tpu_custom_call.1} parent=1 // pred_check
      _
    $region27: #{tpu_custom_call.1} parent=1 // pred_check_branch
      %57 = sbr.rel (0) target = $region29
    $region28: #{tpu_custom_call.1} parent=1 // pred_region
      %59 = dma.done [#allocation7], 16
    $region29: #{tpu_custom_call.1} parent=1 // pred_fallthru
      _
    // Predicated region
    $region30: #{tpu_custom_call.1} parent=1 // pred_check
      _
    $region31: #{tpu_custom_call.1} parent=1 // pred_check_branch
      %61 = sbr.rel (0) target = $region33
    $region32: #{tpu_custom_call.1} parent=1 // pred_region
      %63 = dma.done [#allocation7], 512
    $region33: #{tpu_custom_call.1} parent=1 // pred_fallthru
      _
    %p64 = scmp.eq.s32.totalorder 0, 0
    // Predicated region
    $region34: #{tpu_custom_call.1} parent=1 // pred_check
      %p65 = pneg %p64
    $region35: #{tpu_custom_call.1} parent=1 // pred_check_branch
      %67 = sbr.rel (%p65) target = $region37
    $region36: #{tpu_custom_call.1} parent=1 // pred_region
      %v68 = vld [vmem:[#allocation3] sm:$0xff]
      %vm69 = vcmask 261120
      %v70 = vsel %vm69, %v68, 0.0
      %71 = vadd.xlane.f32.xlu0 %v70
      %v72 = vpop.xlane.xlu0 %71
      %v73 = vrcp.pop 32.0
      %v74 = vmul.f32 32.0, %v73
      %v75 = vsub.f32 1.0, %v74
      %v76 = vmul.f32 %v73, %v75
      %v77 = vadd.f32 %v73, %v76
      %vm78 = vweird.f32 %v73
      %v79 = vsel %vm78, %v73, %v77
      %v80 = vmul.f32 %v72, %v79
      %v81 = vsub.f32 %v68, %v80
      %v82 = vmul.f32 %v81, %v81
      %v83 = vsel %vm69, %v82, 0.0
      %84 = vadd.xlane.f32.xlu0 %v83
      %v85 = vpop.xlane.xlu0 %84
      %v86 = vmul.f32 %v85, %v79
      %v87 = vadd.f32 %v86, 1e-05
      %v88 = vrsqrt.pop %v87
      %v89 = vmul.f32 %v88, %v87
      %v90 = vmul.f32 %v89, %v88
      %v91 = vmul.f32 0.5, %v90
      %v92 = vsub.f32 1.5, %v91
      %v93 = vmul.f32 %v88, %v92
      %vm94 = vweird.f32 %v87
      %vm95 = vweird.f32 %v88
      %vm96 = vmor %vm94, %vm95
      %v97 = vsel %vm96, %v88, %v93
      %v98 = vmul.f32 %v81, %v97
      %v99 = vld [vmem:[#allocation6] sm:$0x1]
      %v101 = vperm.slane %v99, 0
      %v103 = vmul.f32 %v98, %v101
      %v104 = vld [vmem:[%s2] sm:$0x1]
      %v106 = vperm.slane %v104, 0
      %v108 = vadd.f32 %v103, %v106
      %109 = vst.msk [vmem:[#allocation2] sm:$0xff] %vm69, %v108
    $region37: #{tpu_custom_call.1} parent=1 // pred_fallthru
      _
    %v110 = vld [vmem:[#allocation2] sm:$0xff]
    %v111 = vld [vmem:[#allocation8] sm:$0xff]
    %v112 = vld [vmem:[#allocation8 + $0x8] sm:$0xff]
    %v113 = vld [vmem:[#allocation8 + $0x10] sm:$0xff]
    %v114 = vld [vmem:[#allocation8 + $0x18] sm:$0xff]
    %v115 = vld [vmem:[%s4] sm:$0x1]
    %v117 = vperm.slane %v115, 0
    %vm119 = vcmask 261120
    %v121 = vsel %vm119, %v110, 0
    %123 = vmatpush.msra.mxu0 0.0
    %124 = vmatpush.msra.mxu0 0.0
    %125 = vmatpush.msra.mxu0 0.0
    %126 = vmatpush.msra.mxu0 0.0
    %127 = vmatpush.msra.mxu0 0.0
    %128 = vmatpush.msra.mxu0 0.0
    %129 = vmatpush.msra.mxu0 0.0
    %130 = vmatpush.msra.mxu0 0.0
    %131 = vmatpush.msra.mxu0 0.0
    %132 = vmatpush.msra.mxu0 0.0
    %133 = vmatpush.msra.mxu0 0.0
    %134 = vmatpush.msra.mxu0 0.0
    %135 = vmatpush.msra.mxu0 %v114
    %136 = vmatpush.msra.mxu0 %v113
    %137 = vmatpush.msra.mxu0 %v112
    %138 = vmatpush.msra.mxu0 %v111
    %139 = vmatmul.f32.gmra.mxu0 %v121
    %v140 = vpop.f32.mrf.mxu0
    %v141 = vadd.f32 %v117, %v140
    %142 = vdwg.mxu0
    %143 = vst [vmem:[#allocation9] sm:$0xff] %v141
    // Predicated region
    $region38: #{tpu_custom_call.1} parent=1 // pred_check
      _
    $region39: #{tpu_custom_call.1} parent=1 // pred_check_branch
      %145 = sbr.rel (0) target = $region41
    $region40: #{tpu_custom_call.1} parent=1 // pred_region
      %147 = vsyncadd [#allocation5], 0
      %s149 = sshll.u32 [#allocation9], 4
      %s150 = int_to_ptr.vmem [resolvable:$true] %s149
      %s151 = sshll.u32 %s5, 4
      %s152 = int_to_ptr.hbm [resolvable:$true] %s151
      %154 = dma.vmem_to_hbm [thread:$0]  %s150, 128, %s152, [#allocation5]
    $region41: #{tpu_custom_call.1} parent=1 // pred_fallthru
      _
    // Predicated region
    $region42: #{tpu_custom_call.1} parent=1 // pred_check
      _
    $region43: #{tpu_custom_call.1} parent=1 // pred_check_branch
      %156 = sbr.rel (0) target = $region45
    $region44: #{tpu_custom_call.1} parent=1 // pred_region
      %158 = dma.done [#allocation5], 128
    $region45: #{tpu_custom_call.1} parent=1 // pred_fallthru
      _
    %159 = vsyncpa [#allocation4], 1
    %160 = vsyncpa [#allocation7], 1
    %161 = vsyncpa [#allocation5], 1

</llo_original>
